<compile_context>
chip_gen: v5e
topology: v5e:2x2
jax: 0.10.0
libtpu: 0.0.40
codegen_flags: <defaults>
</compile_context>

<pallas_src>
import functools

import jax
import jax.numpy as jnp
from jax.experimental import pallas as pl
from jax.experimental.pallas import tpu as pltpu


def _focal_tversky_partial_kernel(x_ref, t_ref, out_ref, acc_ref, *, hw, needs_mask):
    """Accumulate per-channel [sum(p*t), sum(p), sum(t)] for one (batch, spatial-outer) block.

    x_ref / t_ref : (block_n, C, block_s) logits / targets tile (native dtype).
    acc_ref       : (3, C, block_s) f32 VMEM scratch (lane-dense partial sums).
    out_ref       : (3, C) per-block channel sums (leading grid dims squeezed),
                    written at the last inner (spatial-reduction) step.
    """
    k = pl.program_id(2)
    n_inner = pl.num_programs(2)

    @pl.when(k == 0)
    def _init():
        acc_ref[...] = jnp.zeros_like(acc_ref)

    x = x_ref[...].astype(jnp.float32)
    t = t_ref[...].astype(jnp.float32)
    p = jax.nn.sigmoid(x)

    if needs_mask:
        # Zero out sigmoid values in the zero-padded spatial tail (sigmoid(0)=0.5
        # would otherwise pollute sum(p)). Targets are zero-padded, so sum(t)
        # and sum(p*t) are already unaffected.
        block_s = x_ref.shape[-1]
        blk = pl.program_id(1) * n_inner + k
        lane = jax.lax.broadcasted_iota(jnp.int32, p.shape, 2)
        p = jnp.where(blk * block_s + lane < hw, p, 0.0)

    # Reduce only over the leading (batch) axis per step -- cheap VPU adds.
    # Cross-lane (XLU) reduction is deferred to the finalize step below.
    acc_ref[0] += jnp.sum(p * t, axis=0)   # sum(p*t)  -> TP
    acc_ref[1] += jnp.sum(p, axis=0)       # sum(p)    -> TP + FP
    acc_ref[2] += jnp.sum(t, axis=0)       # sum(t)    -> TP + FN

    @pl.when(k == n_inner - 1)
    def _finalize():
        out_ref[...] = jnp.sum(acc_ref[...], axis=-1)   # (3, C)


def _roundup(v, m):
    return ((v + m - 1) // m) * m


def _pick_block(dim, target, quantum):
    """Largest multiple of `quantum` that divides `dim` and is <= max(target, quantum)."""
    if dim % quantum != 0:
        return dim
    target = max(target, quantum)
    best = quantum
    for cand in range(quantum, dim + 1, quantum):
        if dim % cand == 0 and cand <= target:
            best = cand
    return best


def _make_input_map(n_inner):
    def index_map(i, o, k):
        return (i, 0, o * n_inner + k)
    return index_map


def mul_focal_tversky_loss(inputs, targets, *, alpha=0.3, beta=0.7, gamma=0.75,
                           smooth=1.0, target_tile_elems=None):
    """Pallas implementation of Mul_FocalTversky_Loss.forward. Returns a scalar.

    `targets` may be passed in bf16 / int8 (exact 0/1 values) to halve/quarter
    the target HBM stream; the kernel upcasts in-register. `target_tile_elems`
    optionally caps the per-tile element count (mainly for testing); by default
    the tile size is derived from the device's VMEM capacity.
    """
    assert inputs.shape == targets.shape and inputs.ndim == 4
    n, c, h, w = inputs.shape
    hw = h * w

    # Contiguous reshape (no data movement).
    x = inputs.reshape(n, c, hw)
    t = targets.reshape(n, c, hw)

    # Pad the spatial axis to a lane multiple so tiling is always (8,128)-legal;
    # padded lanes are masked in-kernel.
    padded_hw = _roundup(hw, 128)
    if padded_hw != hw:
        pad = padded_hw - hw
        x = jnp.pad(x, ((0, 0), (0, 0), (0, pad)))
        t = jnp.pad(t, ((0, 0), (0, 0), (0, pad)))

    itemsize_x = jnp.dtype(x.dtype).itemsize
    itemsize_t = jnp.dtype(t.dtype).itemsize
    # Sublane padding of the second-minor (C) axis: 8 (f32) / 16 (bf16) / 32 (int8).
    c_pad_x = _roundup(c, max(8, 32 // itemsize_x))
    c_pad_t = _roundup(c, max(8, 32 // itemsize_t))
    c_pad_acc = _roundup(c, 8)

    # Generation-aware VMEM budget: ~75% of per-core VMEM (64 MiB v7x, 128 MiB v5e/v6e).
    try:
        vmem_cap = int(pltpu.get_tpu_info().vmem_capacity_bytes)
    except Exception:
        vmem_cap = 64 * 1024 * 1024
    budget = min(int(0.75 * vmem_cap), 100 * 1024 * 1024)

    # block_n > 1 amortizes the accumulator RMW and shrinks the scratch block_n x.
    block_n = _pick_block(n, 8, 1)

    # Spatial tile: biggest lane multiple such that (double-buffered both inputs
    # + f32 scratch) fits the budget, optionally capped by target_tile_elems.
    per_lane_bytes = (2 * block_n * (c_pad_x * itemsize_x + c_pad_t * itemsize_t)
                      + 3 * c_pad_acc * 4)
    max_s = max(128, (budget // per_lane_bytes) // 128 * 128)
    if target_tile_elems is not None:
        max_s = min(max_s, max(128, target_tile_elems // max(1, block_n * c_pad_x)))
    block_s = _pick_block(padded_hw, max_s, 128)

    nb = n // block_n
    ns_total = padded_hw // block_s
    # v7x has 2 TensorCores: ensure the parallel grid axes expose >=2 blocks.
    if nb >= 2 or ns_total < 2:
        n_outer = 1
    else:
        n_outer = next((d for d in (2, 3, 4, 5, 6, 7, 8) if ns_total % d == 0), 1)
    n_inner = ns_total // n_outer
    grid = (nb, n_outer, n_inner)

    # Sublane-padding-aware VMEM limit (2 pipeline buffers per input + scratch + headroom).
    tile_bytes = block_n * block_s * (c_pad_x * itemsize_x + c_pad_t * itemsize_t)
    scratch_bytes = 3 * c_pad_acc * block_s * 4
    vmem_limit = int(min(max(vmem_cap - 4 * 1024 * 1024, 32 * 1024 * 1024),
                         max(32 * 1024 * 1024,
                             2 * tile_bytes + scratch_bytes + 4 * 1024 * 1024)))

    kernel = functools.partial(_focal_tversky_partial_kernel,
                               hw=hw, needs_mask=(padded_hw != hw))
    input_map = _make_input_map(n_inner)

    partials = pl.pallas_call(
        kernel,
        out_shape=jax.ShapeDtypeStruct((nb, n_outer, 3, c), jnp.float32),
        grid_spec=pltpu.PrefetchScalarGridSpec(
            num_scalar_prefetch=0,
            grid=grid,
            in_specs=[
                pl.BlockSpec((block_n, c, block_s), input_map),
                pl.BlockSpec((block_n, c, block_s), input_map),
            ],
            out_specs=pl.BlockSpec((None, None, 3, c), lambda i, o, k: (i, o, 0, 0)),
            scratch_shapes=[pltpu.VMEM((3, c, block_s), jnp.float32)],
        ),
        compiler_params=pltpu.CompilerParams(
            dimension_semantics=("parallel", "parallel", "arbitrary"),
            vmem_limit_bytes=vmem_limit,
        ),
    )(x, t)

    # Tiny finalize on (nb, n_outer, 3, C) floats in plain JAX.
    sums = jnp.sum(partials, axis=(0, 1))          # (3, C)
    tp = sums[0]
    fp = sums[1] - sums[0]                          # sum(p) - sum(p*t) = sum((1-t)*p)
    fn = sums[2] - sums[0]                          # sum(t) - sum(p*t) = sum(t*(1-p))
    tversky = (tp + smooth) / (tp + alpha * fp + beta * fn + smooth)
    # max(.,0) guards rounding only; mathematically 1 - tversky >= 0.
    focal = jnp.power(jnp.maximum(1.0 - tversky, 0.0), gamma)
    return jnp.mean(focal)


def _reference(inputs, targets, alpha=0.3, beta=0.7, gamma=0.75, smooth=1.0):
    """Plain-JAX port of the PyTorch forward, for correctness checking."""
    p = jax.nn.sigmoid(inputs.astype(jnp.float32))
    t = targets.astype(jnp.float32)
    c = inputs.shape[1]
    total = 0.0
    for i in range(c):
        p_i = p[:, i, :, :].reshape(-1)
        t_i = t[:, i, :, :].reshape(-1)
        tp = jnp.sum(p_i * t_i)
        fp = jnp.sum((1.0 - t_i) * p_i)
        fn = jnp.sum(t_i * (1.0 - p_i))
        tversky = (tp + smooth) / (tp + alpha * fp + beta * fn + smooth)
        total = total + (1.0 - tversky) ** gamma
    return total / c


if __name__ == "__main__":
    key = jax.random.PRNGKey(0)
    k1, k2, k3, k4 = jax.random.split(key, 4)

    # Config 1: 128-multiple spatial size; forces the multi-tile path
    # (block_n=2, 2 parallel spatial-outer blocks, multi-step inner reduction).
    x1 = jax.random.normal(k1, (2, 4, 32, 32), dtype=jnp.float32) * 2.0
    t1 = (jax.random.uniform(k2, (2, 4, 32, 32)) < 0.5).astype(jnp.float32)
    out1 = jax.block_until_ready(mul_focal_tversky_loss(x1, t1, target_tile_elems=4096))
    ref1 = jax.block_until_ready(_reference(x1, t1))
    if not jnp.allclose(out1, ref1, rtol=1e-5, atol=1e-5):
        raise AssertionError(f"mismatch (config 1): pallas={out1} ref={ref1}")

    # Config 2: non-128-multiple spatial size (padded + masked path), odd channel
    # count, bf16 0/1 targets (native-dtype transport).
    x2 = jax.random.normal(k3, (3, 3, 10, 10), dtype=jnp.float32) * 2.0
    t2 = (jax.random.uniform(k4, (3, 3, 10, 10)) < 0.5).astype(jnp.bfloat16)
    out2 = jax.block_until_ready(mul_focal_tversky_loss(x2, t2))
    ref2 = jax.block_until_ready(_reference(x2, t2))
    if not jnp.allclose(out2, ref2, rtol=1e-5, atol=1e-5):
        raise AssertionError(f"mismatch (config 2): pallas={out2} ref={ref2}")

    print("KERNEL_OK")
</pallas_src>

<mosaic_0001>
module attributes {stable_mosaic.version = 11 : i64} {
  func.func @_focal_tversky_partial_kernel(%arg0: i32, %arg1: i32, %arg2: i32, %arg3: memref<2x4x256xf32, #tpu.memory_space<vmem>>, %arg4: memref<2x4x256xf32, #tpu.memory_space<vmem>>, %arg5: memref<1x1x3x4xf32, #tpu.memory_space<vmem>>, %arg6: memref<3x4x256xf32, #tpu.memory_space<vmem>>) attributes {dimension_semantics = [#tpu.dimension_semantics<parallel>, #tpu.dimension_semantics<parallel>, #tpu.dimension_semantics<arbitrary>], iteration_bounds = array<i64: 1, 2, 2>, scalar_prefetch = 0 : i64, scratch_operands = 1 : i64, tpu.core_type = #tpu.core_type<tc>, window_params = [{transform_indices = @transform_0, window_bounds = array<i64: 2, 4, 256>}, {transform_indices = @transform_1, window_bounds = array<i64: 2, 4, 256>}, {transform_indices = @transform_2, window_bounds = array<i64: 1, 1, 3, 4>}]} {
    %c0_i32 = arith.constant 0 : i32
    %0 = arith.cmpi eq, %arg2, %c0_i32 : i32
    %1 = arith.extui %0 : i1 to i32
    %c0_i32_0 = arith.constant 0 : i32
    %2 = arith.cmpi ne, %1, %c0_i32_0 : i32
    scf.if %2 {
      %cst_26 = arith.constant 0.000000e+00 : f32
      %35 = vector.broadcast %cst_26 : f32 to vector<3x4x256xf32>
      %c0_27 = arith.constant 0 : index
      %c0_28 = arith.constant 0 : index
      %c0_29 = arith.constant 0 : index
      %36 = vector.load %arg6[%c0_27, %c0_28, %c0_29] : memref<3x4x256xf32, #tpu.memory_space<vmem>>, vector<3x4x256xf32>
      tpu.vector_store %arg6[%c0_27, %c0_28, %c0_29], %35 {strides = array<i32>} : memref<3x4x256xf32, #tpu.memory_space<vmem>>, vector<3x4x256xf32>,
    } else {
    }
    %c0 = arith.constant 0 : index
    %c0_1 = arith.constant 0 : index
    %c0_2 = arith.constant 0 : index
    %3 = vector.load %arg3[%c0, %c0_1, %c0_2] : memref<2x4x256xf32, #tpu.memory_space<vmem>>, vector<2x4x256xf32>
    %c0_3 = arith.constant 0 : index
    %c0_4 = arith.constant 0 : index
    %c0_5 = arith.constant 0 : index
    %4 = vector.load %arg4[%c0_3, %c0_4, %c0_5] : memref<2x4x256xf32, #tpu.memory_space<vmem>>, vector<2x4x256xf32>
    %5 = arith.negf %3 : vector<2x4x256xf32>
    %6 = math.exp %5 : vector<2x4x256xf32>
    %cst = arith.constant 1.000000e+00 : f32
    %7 = vector.broadcast %cst : f32 to vector<2x4x256xf32>
    %8 = arith.addf %7, %6 : vector<2x4x256xf32>
    %9 = arith.divf %7, %8 : vector<2x4x256xf32>
    %c0_6 = arith.constant 0 : index
    %c0_7 = arith.constant 0 : index
    %c0_8 = arith.constant 0 : index
    %10 = vector.load %arg6[%c0_6, %c0_7, %c0_8] : memref<3x4x256xf32, #tpu.memory_space<vmem>>, vector<1x4x256xf32>
    %11 = vector.shape_cast %10 : vector<1x4x256xf32> to vector<4x256xf32>
    %12 = arith.mulf %9, %4 : vector<2x4x256xf32>
    %cst_9 = arith.constant dense<0.000000e+00> : vector<4x256xf32>
    %13 = vector.multi_reduction <add>, %12, %cst_9 [0] : vector<2x4x256xf32> to vector<4x256xf32>
    %14 = arith.addf %11, %13 : vector<4x256xf32>
    %c0_10 = arith.constant 0 : index
    %c0_11 = arith.constant 0 : index
    %c0_12 = arith.constant 0 : index
    %15 = vector.load %arg6[%c0_10, %c0_11, %c0_12] : memref<3x4x256xf32, #tpu.memory_space<vmem>>, vector<1x4x256xf32>
    %16 = vector.shape_cast %15 : vector<1x4x256xf32> to vector<4x256xf32>
    %17 = vector.shape_cast %14 : vector<4x256xf32> to vector<1x4x256xf32>
    tpu.vector_store %arg6[%c0_10, %c0_11, %c0_12], %17 {strides = array<i32>} : memref<3x4x256xf32, #tpu.memory_space<vmem>>, vector<1x4x256xf32>,
    %c1 = arith.constant 1 : index
    %c0_13 = arith.constant 0 : index
    %c0_14 = arith.constant 0 : index
    %18 = vector.load %arg6[%c1, %c0_13, %c0_14] : memref<3x4x256xf32, #tpu.memory_space<vmem>>, vector<1x4x256xf32>
    %19 = vector.shape_cast %18 : vector<1x4x256xf32> to vector<4x256xf32>
    %cst_15 = arith.constant dense<0.000000e+00> : vector<4x256xf32>
    %20 = vector.multi_reduction <add>, %9, %cst_15 [0] : vector<2x4x256xf32> to vector<4x256xf32>
    %21 = arith.addf %19, %20 : vector<4x256xf32>
    %c1_16 = arith.constant 1 : index
    %c0_17 = arith.constant 0 : index
    %c0_18 = arith.constant 0 : index
    %22 = vector.load %arg6[%c1_16, %c0_17, %c0_18] : memref<3x4x256xf32, #tpu.memory_space<vmem>>, vector<1x4x256xf32>
    %23 = vector.shape_cast %22 : vector<1x4x256xf32> to vector<4x256xf32>
    %24 = vector.shape_cast %21 : vector<4x256xf32> to vector<1x4x256xf32>
    tpu.vector_store %arg6[%c1_16, %c0_17, %c0_18], %24 {strides = array<i32>} : memref<3x4x256xf32, #tpu.memory_space<vmem>>, vector<1x4x256xf32>,
    %c2 = arith.constant 2 : index
    %c0_19 = arith.constant 0 : index
    %c0_20 = arith.constant 0 : index
    %25 = vector.load %arg6[%c2, %c0_19, %c0_20] : memref<3x4x256xf32, #tpu.memory_space<vmem>>, vector<1x4x256xf32>
    %26 = vector.shape_cast %25 : vector<1x4x256xf32> to vector<4x256xf32>
    %cst_21 = arith.constant dense<0.000000e+00> : vector<4x256xf32>
    %27 = vector.multi_reduction <add>, %4, %cst_21 [0] : vector<2x4x256xf32> to vector<4x256xf32>
    %28 = arith.addf %26, %27 : vector<4x256xf32>
    %c2_22 = arith.constant 2 : index
    %c0_23 = arith.constant 0 : index
    %c0_24 = arith.constant 0 : index
    %29 = vector.load %arg6[%c2_22, %c0_23, %c0_24] : memref<3x4x256xf32, #tpu.memory_space<vmem>>, vector<1x4x256xf32>
    %30 = vector.shape_cast %29 : vector<1x4x256xf32> to vector<4x256xf32>
    %31 = vector.shape_cast %28 : vector<4x256xf32> to vector<1x4x256xf32>
    tpu.vector_store %arg6[%c2_22, %c0_23, %c0_24], %31 {strides = array<i32>} : memref<3x4x256xf32, #tpu.memory_space<vmem>>, vector<1x4x256xf32>,
    %c1_i32 = arith.constant 1 : i32
    %32 = arith.cmpi eq, %arg2, %c1_i32 : i32
    %33 = arith.extui %32 : i1 to i32
    %c0_i32_25 = arith.constant 0 : i32
    %34 = arith.cmpi ne, %33, %c0_i32_25 : i32
    scf.if %34 {
      %c0_26 = arith.constant 0 : index
      %c0_27 = arith.constant 0 : index
      %c0_28 = arith.constant 0 : index
      %35 = vector.load %arg6[%c0_26, %c0_27, %c0_28] : memref<3x4x256xf32, #tpu.memory_space<vmem>>, vector<3x4x256xf32>
      %cst_29 = arith.constant dense<0.000000e+00> : vector<3x4xf32>
      %36 = vector.multi_reduction <add>, %35, %cst_29 [2] : vector<3x4x256xf32> to vector<3x4xf32>
      %c0_30 = arith.constant 0 : index
      %c0_31 = arith.constant 0 : index
      %c0_32 = arith.constant 0 : index
      %c0_33 = arith.constant 0 : index
      %37 = vector.load %arg5[%c0_30, %c0_31, %c0_32, %c0_33] : memref<1x1x3x4xf32, #tpu.memory_space<vmem>>, vector<1x1x3x4xf32>
      %38 = vector.shape_cast %37 : vector<1x1x3x4xf32> to vector<3x4xf32>
      %39 = vector.shape_cast %36 : vector<3x4xf32> to vector<1x1x3x4xf32>
      tpu.vector_store %arg5[%c0_30, %c0_31, %c0_32, %c0_33], %39 {strides = array<i32>} : memref<1x1x3x4xf32, #tpu.memory_space<vmem>>, vector<1x1x3x4xf32>,
    } else {
    }
    return
  }
  func.func @transform_0(%arg0: i32, %arg1: i32, %arg2: i32) -> (i32, i32, i32) {
    %c2_i32 = arith.constant 2 : i32
    %0 = arith.muli %arg1, %c2_i32 : i32
    %1 = arith.addi %0, %arg2 : i32
    %c0_i32 = arith.constant 0 : i32
    %c0_i32_0 = arith.constant 0 : i32
    return %arg0, %c0_i32, %1 : i32, i32, i32
  }
  func.func @transform_1(%arg0: i32, %arg1: i32, %arg2: i32) -> (i32, i32, i32) {
    %c2_i32 = arith.constant 2 : i32
    %0 = arith.muli %arg1, %c2_i32 : i32
    %1 = arith.addi %0, %arg2 : i32
    %c0_i32 = arith.constant 0 : i32
    %c0_i32_0 = arith.constant 0 : i32
    return %arg0, %c0_i32, %1 : i32, i32, i32
  }
  func.func @transform_2(%arg0: i32, %arg1: i32, %arg2: i32) -> (i32, i32, i32, i32) {
    %c0_i32 = arith.constant 0 : i32
    %c0_i32_0 = arith.constant 0 : i32
    %c0_i32_1 = arith.constant 0 : i32
    return %arg0, %arg1, %c0_i32, %c0_i32_0 : i32, i32, i32, i32
  }
}

</mosaic_0001>

<llo_original>
// kernel: tpu_custom_call.1
$region0: #{tpu_custom_call.1}
  #allocation0 [shape = 'u32[]', space=smem, size = 0x4, offset = 0x4, fixed_abs, tag = 'smem constant byte address 0x4 - core index']
  #allocation1 [shape = 'u32[72,128]{1,0:T(1,128)}', space=vmem, size = 0x9000, scoped, tag = 'internal scratch']
  #allocation2 [shape = 'f32[3,4,256]{2,1,0:T(4,128)}', space=vmem, size = 0x3000, scoped, tag = 'scratch operand']
  %s0 = inlined_call_operand.hbm [shape: f32[2,4,1024], index: 0, kind: input, shape index: {}]
  %s1 = inlined_call_operand.hbm [shape: f32[2,4,1024], index: 1, kind: input, shape index: {}]
  %s2 = inlined_call_operand.vmem [shape: f32[1,2,3,4], index: 2, kind: output, shape index: {}]
  %s3 = sld [smem:[#allocation0]]
  $region57: #{tpu_custom_call.1} parent=0
    _
  %s5 = ssub.s32 1, %s3
  %s6 = scalar_select 0, %s5, %s3
  $region1: #{tpu_custom_call.1} parent=0
    #allocation3 [shape = 'u8[16384]{0}', space=vmem, size = 0x4000, scoped, tag = 'input window, operand 0']
    #allocation4 [shape = 's32[2]{0}', space=sflag, size = 0x8, scoped, tag = 'scoped memory for tpu_custom_call.1']
    #allocation5 [shape = 'u8[16384]{0}', space=vmem, size = 0x4000, scoped, tag = 'input window, operand 1']
    #allocation6 [shape = 's32[2]{0}', space=sflag, size = 0x8, scoped, tag = 'scoped memory for tpu_custom_call.1']
    %7 = vsyncpa [#allocation4], 0
    %s8 = scalar_lea.sflag [#allocation4], 1
    %9 = vsyncpa %s8, 0
    %10 = vsyncpa [#allocation6], 0
    %s11 = scalar_lea.sflag [#allocation6], 1
    %12 = vsyncpa %s11, 0
    loop: start=0, step=1, limit=6
    $region2: #{tpu_custom_call.1} parent=1 // loop_pre_header
      _
    $region3: #{tpu_custom_call.1} parent=1 // loop_header
      %s14 = sphi 0, %s18
      %p15 = scmp.ge.s32.totalorder %s14, 6
      %s21 = sphi 0, %s40
      %s22 = sphi 0, %s36
      %s23 = sphi 0, %s32
      %s24 = sphi 0, %s21
      %s25 = sphi 0, %s22
      %s26 = sphi 0, %s23
      %s27 = sphi 0, %s24
      %s28 = sphi 0, %s25
      %s29 = sphi 0, %s26
      %s49 = sphi 0, %s51
      %s52 = sphi 0, %s49
      %s53 = sphi 0, %s52
      %s69 = sphi 0, %s53
      %s81 = sphi 0, %s83
      %s84 = sphi 0, %s81
      %s85 = sphi 0, %s84
      %s101 = sphi 0, %s85
      %s109 = sphi 0, %s111
      %s112 = sphi 0, %s109
      %s113 = sphi 0, %s112
      %s129 = sphi 0, %s113
    $region4: #{tpu_custom_call.1} parent=1 // loop_header_branch
      %17 = sbr.rel (%p15) target = $region8
    $region5: #{tpu_custom_call.1} parent=1 // loop_body
      %s19 = ssub.s32 %s14, 1
      %s20 = ssub.s32 %s14, 2
      %s30 = sadd.s32 1, %s23
      %p31 = scmp.ge.s32.totalorder %s30, 2
      %s32 = scalar_select %p31, 0, %s30
      %s33 = sadd.s32 1, %s22
      %s34 = scalar_select %p31, %s33, %s22
      %p35 = scmp.ge.s32.totalorder %s34, 2
      %s36 = scalar_select %p35, 0, %s34
      %s37 = sadd.s32 1, %s21
      %s38 = scalar_select %p35, %s37, %s21
      %p39 = scmp.ge.s32.totalorder %s38, 1
      %s40 = scalar_select %p39, 0, %s38
      %s41 = smul.u32 %s22, 2
      %s42 = sadd.s32 %s41, %s23
      %s43 = smul.u32 %s36, 2
      %s44 = sadd.s32 %s43, %s32
      %s45 = ssub.s32 %s21, %s40
      %s46 = ssub.s32 %s42, %s44
      %s47 = sor.u32 %s45, %s46
      %p48 = scmp.eq.s32.totalorder %s47, 0
      %s50 = sadd.s32 %s49, 1
      %s51 = scalar_select %p48, %s49, %s50
      %p54 = pneg %p48
      %p55 = scmp.eq.s32.totalorder %s14, 3
      %p56 = por %p54, %p55
      %p57 = scmp.ne.s32.totalorder %s49, %s52
      %p58 = scmp.eq.s32.totalorder %s14, 0
      %p59 = por %p57, %p58
      %p60 = scmp.ne.s32.totalorder %s49, %s52
      %p61 = scmp.eq.s32.totalorder %s19, 3
      %p62 = por %p60, %p61
      %p63 = scmp.ne.s32.totalorder %s52, %s53
      %p64 = scmp.eq.s32.totalorder %s19, 0
      %p65 = por %p63, %p64
      %p66 = scmp.ne.s32.totalorder %s52, %s53
      %p67 = scmp.eq.s32.totalorder %s20, 3
      %p68 = por %p66, %p67
      %p70 = scmp.ne.s32.totalorder %s53, %s69
      %p71 = scmp.eq.s32.totalorder %s20, 0
      %p72 = por %p70, %p71
      %s73 = smul.u32 %s22, 2
      %s74 = sadd.s32 %s73, %s23
      %s75 = smul.u32 %s36, 2
      %s76 = sadd.s32 %s75, %s32
      %s77 = ssub.s32 %s21, %s40
      %s78 = ssub.s32 %s74, %s76
      %s79 = sor.u32 %s77, %s78
      %p80 = scmp.eq.s32.totalorder %s79, 0
      %s82 = sadd.s32 %s81, 1
      %s83 = scalar_select %p80, %s81, %s82
      %p86 = pneg %p80
      %p87 = scmp.eq.s32.totalorder %s14, 3
      %p88 = por %p86, %p87
      %p89 = scmp.ne.s32.totalorder %s81, %s84
      %p90 = scmp.eq.s32.totalorder %s14, 0
      %p91 = por %p89, %p90
      %p92 = scmp.ne.s32.totalorder %s81, %s84
      %p93 = scmp.eq.s32.totalorder %s19, 3
      %p94 = por %p92, %p93
      %p95 = scmp.ne.s32.totalorder %s84, %s85
      %p96 = scmp.eq.s32.totalorder %s19, 0
      %p97 = por %p95, %p96
      %p98 = scmp.ne.s32.totalorder %s84, %s85
      %p99 = scmp.eq.s32.totalorder %s20, 3
      %p100 = por %p98, %p99
      %p102 = scmp.ne.s32.totalorder %s85, %s101
      %p103 = scmp.eq.s32.totalorder %s20, 0
      %p104 = por %p102, %p103
      %s105 = ssub.s32 %s21, %s40
      %s106 = ssub.s32 %s22, %s36
      %s107 = sor.u32 %s105, %s106
      %p108 = scmp.eq.s32.totalorder %s107, 0
      %s110 = sadd.s32 %s109, 1
      %s111 = scalar_select %p108, %s109, %s110
      %p114 = pneg %p108
      %p115 = scmp.eq.s32.totalorder %s14, 3
      %p116 = por %p114, %p115
      %p117 = scmp.ne.s32.totalorder %s109, %s112
      %p118 = scmp.eq.s32.totalorder %s14, 0
      %p119 = por %p117, %p118
      %p120 = scmp.ne.s32.totalorder %s109, %s112
      %p121 = scmp.eq.s32.totalorder %s19, 3
      %p122 = por %p120, %p121
      %p123 = scmp.ne.s32.totalorder %s112, %s113
      %p124 = scmp.eq.s32.totalorder %s19, 0
      %p125 = por %p123, %p124
      %p126 = scmp.ne.s32.totalorder %s112, %s113
      %p127 = scmp.eq.s32.totalorder %s20, 3
      %p128 = por %p126, %p127
      %p130 = scmp.ne.s32.totalorder %s113, %s129
      %p131 = scmp.eq.s32.totalorder %s20, 0
      %p132 = por %p130, %p131
      %p133 = scmp.le.s32.totalorder 1, %s14
      %p134 = scmp.lt.s32.totalorder %s14, 5
      %p135 = pnand %p133, %p134
      %p136 = pneg %p135
      // Predicated region
      $region9: #{tpu_custom_call.1} parent=5 // pred_check
        _
      $region10: #{tpu_custom_call.1} parent=5 // pred_check_branch
        %138 = sbr.rel (%p135) target = $region12
      $region11: #{tpu_custom_call.1} parent=5 // pred_region
        %s139 = ssub.s32 %s14, 1
      $region12: #{tpu_custom_call.1} parent=5 // pred_fallthru
        _
      %p140 = scmp.lt.s32.totalorder %s14, 4
      // Predicated region
      $region13: #{tpu_custom_call.1} parent=5 // pred_check
        %p141 = pneg %p140
      $region14: #{tpu_custom_call.1} parent=5 // pred_check_branch
        %143 = sbr.rel (%p141) target = $region16
      $region15: #{tpu_custom_call.1} parent=5 // pred_region
        // Predicated region
        $region17: #{tpu_custom_call.1} parent=15 // pred_check
          %p144 = pneg %p59
        $region18: #{tpu_custom_call.1} parent=15 // pred_check_branch
          %146 = sbr.rel (%p144) target = $region20
        $region19: #{tpu_custom_call.1} parent=15 // pred_region
          %s147 = sand.u32 %s49, 1
          %s148 = scalar_lea.sflag [#allocation4], %s147
          %s149 = sand.u32 %s49, 1
          %s150 = smul.addr %s149, 16
          %s151 = scalar_lea.vmem [#allocation3], %s150
          %s152 = smul.u32 %s22, 2
          %s153 = sadd.s32 %s152, %s23
          %s154 = smul.u32 2, %s21
          %s155 = smul.u32 2, %s153
          %157 = vsyncadd %s148, 0
          %s158 = smul.addr %s154, 8
          %s159 = sadd.s32 %s155, %s158
          %s160 = smul.addr %s159, 4
          %s161 = scalar_lea.hbm %s0, %s160
          %s162 = sshll.u32 %s161, 4
          %s163 = int_to_ptr.hbm [resolvable:$true] %s162
          %s164 = sshll.u32 %s151, 4
          %s165 = int_to_ptr.vmem [resolvable:$true] %s164
          %170 = dma.hbm_to_vmem [thread:$0]  %s163, 256, %s165, %s148, 512, 128, 8
        $region20: #{tpu_custom_call.1} parent=15 // pred_fallthru
          _
        // Predicated region
        $region21: #{tpu_custom_call.1} parent=15 // pred_check
          %p171 = pneg %p91
        $region22: #{tpu_custom_call.1} parent=15 // pred_check_branch
          %173 = sbr.rel (%p171) target = $region24
        $region23: #{tpu_custom_call.1} parent=15 // pred_region
          %s174 = sand.u32 %s81, 1
          %s175 = scalar_lea.sflag [#allocation6], %s174
          %s176 = sand.u32 %s81, 1
          %s177 = smul.addr %s176, 16
          %s178 = scalar_lea.vmem [#allocation5], %s177
          %s179 = smul.u32 %s22, 2
          %s180 = sadd.s32 %s179, %s23
          %s181 = smul.u32 2, %s21
          %s182 = smul.u32 2, %s180
          %184 = vsyncadd %s175, 0
          %s185 = smul.addr %s181, 8
          %s186 = sadd.s32 %s182, %s185
          %s187 = smul.addr %s186, 4
          %s188 = scalar_lea.hbm %s1, %s187
          %s189 = sshll.u32 %s188, 4
          %s190 = int_to_ptr.hbm [resolvable:$true] %s189
          %s191 = sshll.u32 %s178, 4
          %s192 = int_to_ptr.vmem [resolvable:$true] %s191
          %197 = dma.hbm_to_vmem [thread:$0]  %s190, 256, %s192, %s175, 512, 128, 8
        $region24: #{tpu_custom_call.1} parent=15 // pred_fallthru
          _
      $region16: #{tpu_custom_call.1} parent=5 // pred_fallthru
        _
      %p198 = scmp.le.s32.totalorder 1, %s14
      %p199 = scmp.lt.s32.totalorder %s14, 5
      %p200 = pnand %p198, %p199
      %p201 = pneg %p200
      // Predicated region
      $region25: #{tpu_custom_call.1} parent=5 // pred_check
        _
      $region26: #{tpu_custom_call.1} parent=5 // pred_check_branch
        %203 = sbr.rel (%p200) target = $region28
      $region27: #{tpu_custom_call.1} parent=5 // pred_region
        %s204 = ssub.s32 %s14, 1
        %s205 = sand.u32 %s52, 1
        %s206 = scalar_lea.sflag [#allocation4], %s205
        %s207 = sand.u32 %s52, 1
        %s208 = smul.addr %s207, 16
        %s209 = scalar_lea.vmem [#allocation3], %s208
        // Predicated region
        $region29: #{tpu_custom_call.1} parent=27 // pred_check
          %p210 = pneg %p65
        $region30: #{tpu_custom_call.1} parent=27 // pred_check_branch
          %212 = sbr.rel (%p210) target = $region32
        $region31: #{tpu_custom_call.1} parent=27 // pred_region
          %214 = dma.done %s206, 256
        $region32: #{tpu_custom_call.1} parent=27 // pred_fallthru
          _
        %s215 = sand.u32 %s84, 1
        %s216 = scalar_lea.sflag [#allocation6], %s215
        %s217 = sand.u32 %s84, 1
        %s218 = smul.addr %s217, 16
        %s219 = scalar_lea.vmem [#allocation5], %s218
        // Predicated region
        $region33: #{tpu_custom_call.1} parent=27 // pred_check
          %p220 = pneg %p97
        $region34: #{tpu_custom_call.1} parent=27 // pred_check_branch
          %222 = sbr.rel (%p220) target = $region36
        $region35: #{tpu_custom_call.1} parent=27 // pred_region
          %224 = dma.done %s216, 256
        $region36: #{tpu_custom_call.1} parent=27 // pred_fallthru
          _
        %s225 = sand.u32 %s52, 1
        %s226 = scalar_lea.sflag [#allocation4], %s225
        %s227 = sand.u32 %s52, 1
        %s228 = smul.addr %s227, 16
        %s229 = scalar_lea.vmem [#allocation3], %s228
        %p230 = pneg %p65
        %p231 = pneg %p62
        %s232 = sand.u32 %s84, 1
        %s233 = scalar_lea.sflag [#allocation6], %s232
        %s234 = sand.u32 %s84, 1
        %s235 = smul.addr %s234, 16
        %s236 = scalar_lea.vmem [#allocation5], %s235
        %p237 = pneg %p97
        %p238 = pneg %p94
        %p239 = pneg %p125
        %p240 = pneg %p122
        %p241 = scmp.lt.s32.totalorder %s24, 0
        %s242 = scalar_select %p241, %s24, 0
        %p243 = scmp.lt.s32.totalorder %s25, 1
        %s244 = scalar_select %p243, %s25, 1
        %s245 = smul.addr %s242, 2
        %s246 = sadd.s32 %s244, %s245
        %s247 = smul.addr %s246, 4
        %s248 = scalar_lea.vmem %s2, %s247
        %s249 = smul.u32 %s25, 2
        %s250 = sadd.s32 %s249, %s26
        %s251 = smul.u32 2, %s24
        %s252 = smul.u32 2, %s250
        %s253 = smul.u32 %s25, 2
        %s254 = sadd.s32 %s253, %s26
        %s255 = smul.u32 2, %s24
        %s256 = smul.u32 2, %s254
        %p257 = scmp.lt.s32.totalorder %s24, 0
        %s258 = scalar_select %p257, %s24, 0
        %p259 = scmp.lt.s32.totalorder %s25, 1
        %s260 = scalar_select %p259, %s25, 1
        %s261 = smul.addr %s258, 2
        %s262 = sadd.s32 %s260, %s261
        %s263 = smul.addr %s262, 4
        %s264 = scalar_lea.vmem %s2, %s263
        %p265 = scmp.eq.s32.totalorder %s26, 0
        // Predicated region
        $region37: #{tpu_custom_call.1} parent=27 // pred_check
          %p266 = pneg %p265
        $region38: #{tpu_custom_call.1} parent=27 // pred_check_branch
          %268 = sbr.rel (%p266) target = $region40
        $region39: #{tpu_custom_call.1} parent=27 // pred_region
          %269 = vst [vmem:[#allocation2] sm:$0xff] 0.0
          %270 = vst [vmem:[#allocation2 + $0x8] sm:$0xff] 0.0
          %271 = vst [vmem:[#allocation2 + $0x10] sm:$0xff] 0.0
        $region40: #{tpu_custom_call.1} parent=27 // pred_fallthru
          _
        %v272 = vld [vmem:[%s209] sm:$0xff]
        %v273 = vld [vmem:[%s209 + $0x8] sm:$0xff]
        %v274 = vld [vmem:[%s219] sm:$0xff]
        %v275 = vld [vmem:[%s219 + $0x8] sm:$0xff]
        %v276 = vxor.u32 %v272, 2147483648
        %v277 = vxor.u32 %v273, 2147483648
        %v278 = vmul.f32 %v276, 1.442695
        %v279 = vpow.pop %v278
        %v280 = vmul.f32 %v277, 1.442695
        %v281 = vpow.pop %v280
        %v282 = vadd.f32 %v279, 1.0
        %v283 = vadd.f32 %v281, 1.0
        %v284 = vrcp.pop %v282
        %v285 = vmul.f32 %v282, %v284
        %v286 = vsub.f32 1.0, %v285
        %v287 = vmul.f32 %v284, %v286
        %v288 = vadd.f32 %v284, %v287
        %vm289 = vweird.f32 %v282
        %vm290 = vweird.f32 %v284
        %vm291 = vmor %vm289, %vm290
        %v292 = vsel %vm291, %v284, %v288
        %v293 = vand.u32 2147483647, %v282
        %vm294 = vcmp.eq.f32.partialorder %v293, 8.507059e+37
        %v295 = vand.u32 %v282, 2147483648
        %v296 = vor.u32 1.1754944e-38, %v295
        %v297 = vsel %vm294, %v296, %v292
        %v298 = vmul.f32 1.0, %v297
        %v299 = vrcp.pop %v283
        %v300 = vmul.f32 %v283, %v299
        %v301 = vsub.f32 1.0, %v300
        %v302 = vmul.f32 %v299, %v301
        %v303 = vadd.f32 %v299, %v302
        %vm304 = vweird.f32 %v283
        %vm305 = vweird.f32 %v299
        %vm306 = vmor %vm304, %vm305
        %v307 = vsel %vm306, %v299, %v303
        %v308 = vand.u32 2147483647, %v283
        %vm309 = vcmp.eq.f32.partialorder %v308, 8.507059e+37
        %v310 = vand.u32 %v283, 2147483648
        %v311 = vor.u32 1.1754944e-38, %v310
        %v312 = vsel %vm309, %v311, %v307
        %v313 = vmul.f32 1.0, %v312
        %v314 = vld [vmem:[#allocation2] sm:$0xff]
        %v315 = vmul.f32 %v298, %v274
        %v316 = vmul.f32 %v313, %v275
        %319 = vst [vmem:[#allocation1] ss:$2 sm:$0xff] %v315
        %v320 = vld.sshfl [vmem:[#allocation1] sm:$0xff pattern:$0x75316420]
        %v321 = vld.sshfl [vmem:[#allocation1 + $0x8] sm:$0xff pattern:$0x75316420]
        %s322 = scalar_lea.vmem [#allocation1], 16
        %323 = vst [vmem:[%s322] ss:$2 sm:$0xff] %v316
        %v324 = vld.sshfl [vmem:[#allocation1 + $0x10] sm:$0xff pattern:$0x75316420]
        %v325 = vld.sshfl [vmem:[#allocation1 + $0x18] sm:$0xff pattern:$0x75316420]
        %vm330 = vcmask 1043456
        %v331 = vsel %vm330, %v320, 0.0
        %v332 = vsel %vm330, %v324, 0.0
        %v333 = vadd.f32 %v331, %v332
        %v334 = vsel %vm330, %v321, 0.0
        %v335 = vsel %vm330, %v325, 0.0
        %v336 = vadd.f32 %v334, %v335
        %v339 = vrot.slane %v336, 4
        %v340 = vsel %vm330, %v333, %v339
        %v342 = vadd.f32 %v314, %v340
        %343 = vst [vmem:[#allocation2] sm:$0xff] %v342
        %s344 = scalar_lea.vmem [#allocation2], 8
        %v345 = vld [vmem:[%s344] sm:$0xff]
        %348 = vst [vmem:[#allocation1] ss:$2 sm:$0xff] %v298
        %v349 = vld.sshfl [vmem:[#allocation1] sm:$0xff pattern:$0x75316420]
        %v350 = vld.sshfl [vmem:[#allocation1 + $0x8] sm:$0xff pattern:$0x75316420]
        %s351 = scalar_lea.vmem [#allocation1], 16
        %352 = vst [vmem:[%s351] ss:$2 sm:$0xff] %v313
        %v353 = vld.sshfl [vmem:[#allocation1 + $0x10] sm:$0xff pattern:$0x75316420]
        %v354 = vld.sshfl [vmem:[#allocation1 + $0x18] sm:$0xff pattern:$0x75316420]
        %v359 = vsel %vm330, %v349, 0.0
        %v360 = vsel %vm330, %v353, 0.0
        %v361 = vadd.f32 %v359, %v360
        %v362 = vsel %vm330, %v350, 0.0
        %v363 = vsel %vm330, %v354, 0.0
        %v364 = vadd.f32 %v362, %v363
        %v367 = vrot.slane %v364, 4
        %v368 = vsel %vm330, %v361, %v367
        %v370 = vadd.f32 %v345, %v368
        %371 = vst [vmem:[%s344] sm:$0xff] %v370
        %s372 = scalar_lea.vmem [#allocation2], 16
        %v373 = vld [vmem:[%s372] sm:$0xff]
        %376 = vst [vmem:[#allocation1] ss:$2 sm:$0xff] %v274
        %v377 = vld.sshfl [vmem:[#allocation1] sm:$0xff pattern:$0x75316420]
        %v378 = vld.sshfl [vmem:[#allocation1 + $0x8] sm:$0xff pattern:$0x75316420]
        %s379 = scalar_lea.vmem [#allocation1], 16
        %380 = vst [vmem:[%s379] ss:$2 sm:$0xff] %v275
        %v381 = vld.sshfl [vmem:[#allocation1 + $0x10] sm:$0xff pattern:$0x75316420]
        %v382 = vld.sshfl [vmem:[#allocation1 + $0x18] sm:$0xff pattern:$0x75316420]
        %v387 = vsel %vm330, %v377, 0.0
        %v388 = vsel %vm330, %v381, 0.0
        %v389 = vadd.f32 %v387, %v388
        %v390 = vsel %vm330, %v378, 0.0
        %v391 = vsel %vm330, %v382, 0.0
        %v392 = vadd.f32 %v390, %v391
        %v395 = vrot.slane %v392, 4
        %v396 = vsel %vm330, %v389, %v395
        %v398 = vadd.f32 %v373, %v396
        %399 = vst [vmem:[%s372] sm:$0xff] %v398
        %p400 = scmp.eq.s32.totalorder %s26, 1
        // Predicated region
        $region41: #{tpu_custom_call.1} parent=27 // pred_check
          %p401 = pneg %p400
        $region42: #{tpu_custom_call.1} parent=27 // pred_check_branch
          %403 = sbr.rel (%p401) target = $region44
        $region43: #{tpu_custom_call.1} parent=27 // pred_region
          %v404 = vld [vmem:[#allocation2] sm:$0xff]
          %v405 = vld [vmem:[#allocation2 + $0x8] sm:$0xff]
          %v406 = vld [vmem:[#allocation2 + $0x10] sm:$0xff]
          %410 = vst [vmem:[#allocation1] ss:$2 sm:$0xff] %v404
          %v411 = vld.sshfl [vmem:[#allocation1] sm:$0xff pattern:$0x75316420]
          %v412 = vld.sshfl [vmem:[#allocation1 + $0x8] sm:$0xff pattern:$0x75316420]
          %s413 = scalar_lea.vmem [#allocation1], 16
          %414 = vst [vmem:[%s413] ss:$2 sm:$0xff] %v405
          %v415 = vld.sshfl [vmem:[#allocation1 + $0x10] sm:$0xff pattern:$0x75316420]
          %v416 = vld.sshfl [vmem:[#allocation1 + $0x18] sm:$0xff pattern:$0x75316420]
          %s417 = scalar_lea.vmem [#allocation1], 32
          %418 = vst [vmem:[%s417] ss:$2 sm:$0xff] %v406
          %v419 = vld.sshfl [vmem:[#allocation1 + $0x20] sm:$0xff pattern:$0x75316420]
          %v420 = vld.sshfl [vmem:[#allocation1 + $0x28] sm:$0xff pattern:$0x75316420]
          %v427 = vsel %vm330, %v411, 0.0
          %v428 = vsel %vm330, %v412, 0.0
          %v429 = vadd.f32 %v427, %v428
          %430 = vadd.xlane.f32.xlu0 %v429
          %v431 = vpop.xlane.xlu0 %430
          %v432 = vsel %vm330, %v415, 0.0
          %v433 = vsel %vm330, %v416, 0.0
          %v434 = vadd.f32 %v432, %v433
          %435 = vadd.xlane.f32.xlu0 %v434
          %v436 = vpop.xlane.xlu0 %435
          %v437 = vsel %vm330, %v419, 0.0
          %v438 = vsel %vm330, %v420, 0.0
          %v439 = vadd.f32 %v437, %v438
          %440 = vadd.xlane.f32.xlu0 %v439
          %v441 = vpop.xlane.xlu0 %440
          %v445 = vlaneseq
          %v446 = vand.u32 %v445, 127
          %v447 = vperm.slane %v431, %v446
          %v448 = vperm.slane %v436, %v446
          %v449 = vperm.slane %v441, %v446
          %vm450 = vcmask 1041409
          %v451 = vsel %vm450, %v448, %v447
          %vm452 = vcmask 1042434
          %v453 = vsel %vm452, %v449, %v451
          %vm455 = vcmask 26624
          %456 = vst.msk [vmem:[%s264] sm:$0x7] %vm455, %v453
        $region44: #{tpu_custom_call.1} parent=27 // pred_fallthru
          _
        %p457 = scmp.lt.s32.totalorder %s24, 0
        %s458 = scalar_select %p457, %s24, 0
        %p459 = scmp.lt.s32.totalorder %s25, 1
        %s460 = scalar_select %p459, %s25, 1
        %s461 = smul.addr %s458, 2
        %s462 = sadd.s32 %s460, %s461
        %s463 = smul.addr %s462, 4
        %s464 = scalar_lea.vmem %s2, %s463
        // Predicated region
        $region45: #{tpu_custom_call.1} parent=27 // pred_check
          %p465 = pneg %p122
        $region46: #{tpu_custom_call.1} parent=27 // pred_check_branch
          %467 = sbr.rel (%p465) target = $region48
        $region47: #{tpu_custom_call.1} parent=27 // pred_region
          _
        $region48: #{tpu_custom_call.1} parent=27 // pred_fallthru
          _
      $region28: #{tpu_custom_call.1} parent=5 // pred_fallthru
        _
      %p468 = scmp.le.s32.totalorder 2, %s14
      // Predicated region
      $region49: #{tpu_custom_call.1} parent=5 // pred_check
        %p469 = pneg %p468
      $region50: #{tpu_custom_call.1} parent=5 // pred_check_branch
        %471 = sbr.rel (%p469) target = $region52
      $region51: #{tpu_custom_call.1} parent=5 // pred_region
        %s472 = ssub.s32 %s14, 2
        // Predicated region
        $region53: #{tpu_custom_call.1} parent=51 // pred_check
          %p473 = pneg %p128
        $region54: #{tpu_custom_call.1} parent=51 // pred_check_branch
          %475 = sbr.rel (%p473) target = $region56
        $region55: #{tpu_custom_call.1} parent=51 // pred_region
          %p476 = scmp.lt.s32.totalorder %s27, 0
          %s477 = scalar_select %p476, %s27, 0
          %p478 = scmp.lt.s32.totalorder %s28, 1
          %s479 = scalar_select %p478, %s28, 1
          %s480 = smul.addr %s477, 2
          %s481 = sadd.s32 %s479, %s480
          %s482 = smul.addr %s481, 4
          %s483 = scalar_lea.vmem %s2, %s482
        $region56: #{tpu_custom_call.1} parent=51 // pred_fallthru
          _
      $region52: #{tpu_custom_call.1} parent=5 // pred_fallthru
        _
    $region6: #{tpu_custom_call.1} parent=1 // loop_footer
      %s18 = sadd.s32 1, %s14
    $region7: #{tpu_custom_call.1} parent=1 // loop_footer_branch
      %13 = sbr.rel target = $region3
    $region8: #{tpu_custom_call.1} parent=1 // loop_exit
      _
    %484 = vsyncpa [#allocation4], 1
    %s485 = scalar_lea.sflag [#allocation4], 1
    %486 = vsyncpa %s485, 1
    %487 = vsyncpa [#allocation6], 1
    %s488 = scalar_lea.sflag [#allocation6], 1
    %489 = vsyncpa %s488, 1

</llo_original>
